<compile_context>
chip_gen: v7x
topology: tpu7x:2x2x1
jax: 0.10.0
libtpu: 0.0.40
codegen_flags: <defaults>
</compile_context>

<pallas_src>
import jax
import jax.numpy as jnp
from jax.experimental import pallas as pl
from jax.experimental.pallas import tpu as pltpu

IN_FEATURES = 470
IN_PADDED = 512          # 470 rounded up to a multiple of 128
HIDDEN1 = 512
HIDDEN2 = 64
MAX_TILE_B = 1024        # safe across v5e / v6e / v7x VMEM budgets


def _round_up(x, m):
    return (x + m - 1) // m * m


def mlp_kernel(x_ref, w1_ref, b1_ref, w2_ref, b2_ref, w3_ref, b3_ref, o_ref):
    # Layer 1: (TILE_B, 512) @ (512, 512) -- bf16 operands, f32 accumulation.
    h1 = jnp.dot(x_ref[...], w1_ref[...], preferred_element_type=jnp.float32)
    h1 = jnp.maximum(h1 + b1_ref[...], 0.0)
    # Layer 2: (TILE_B, 512) @ (512, 64).
    h2 = jnp.dot(h1.astype(jnp.bfloat16), w2_ref[...],
                 preferred_element_type=jnp.float32)
    h2 = jnp.maximum(h2 + b2_ref[...], 0.0)
    # Layer 3 (64 -> 1): VPU multiply + XLU lane reduction; MXU stays free.
    o = jnp.sum(h2 * w3_ref[...], axis=-1, keepdims=True) + b3_ref[...]
    o_ref[...] = o.astype(o_ref.dtype)


def init_params(key):
    # Mirrors init_weights(): nn.init.normal_(weight, mean=0, std=0.1).
    # Biases use PyTorch's default Linear init U(-1/sqrt(fan_in), 1/sqrt(fan_in)).
    kw1, kw2, kw3, kb1, kb2, kb3 = jax.random.split(key, 6)
    w1 = 0.1 * jax.random.normal(kw1, (IN_FEATURES, HIDDEN1), jnp.float32)
    w2 = 0.1 * jax.random.normal(kw2, (HIDDEN1, HIDDEN2), jnp.float32)
    w3 = 0.1 * jax.random.normal(kw3, (HIDDEN2, 1), jnp.float32)
    b1 = jax.random.uniform(kb1, (HIDDEN1,), jnp.float32, -1.0, 1.0) / jnp.sqrt(470.0)
    b2 = jax.random.uniform(kb2, (HIDDEN2,), jnp.float32, -1.0, 1.0) / jnp.sqrt(512.0)
    b3 = jax.random.uniform(kb3, (1,), jnp.float32, -1.0, 1.0) / jnp.sqrt(64.0)
    return (w1, b1, w2, b2, w3, b3)


def prepare_params(params):
    """Pad / reshape / cast logical f32 params into the kernel's layout."""
    w1, b1, w2, b2, w3, b3 = params
    # Zero-pad layer-1 input dim 470 -> 512 (padded rows contribute 0).
    w1p = jnp.zeros((IN_PADDED, HIDDEN1), jnp.float32).at[:IN_FEATURES].set(w1)
    return (
        w1p.astype(jnp.bfloat16),                    # (512, 512) bf16
        b1.reshape(1, HIDDEN1).astype(jnp.float32),  # (1, 512)
        w2.astype(jnp.bfloat16),                     # (512, 64) bf16
        b2.reshape(1, HIDDEN2).astype(jnp.float32),  # (1, 64)
        w3.reshape(1, HIDDEN2).astype(jnp.float32),  # (1, 64) row for VPU reduce
        b3.reshape(1, 1).astype(jnp.float32),        # (1, 1)
    )


def simple_linear_forward(x, prepared, max_tile_b=MAX_TILE_B):
    w1, b1, w2, b2, w3, b3 = prepared
    B = x.shape[0]
    tile_b = min(max_tile_b, _round_up(B, 8))
    b_pad = _round_up(B, tile_b)
    num_tiles = b_pad // tile_b

    # Pad features 470 -> 512 and batch to a tile multiple; bf16 halves the
    # dominant activation DMA traffic.
    xp = jnp.zeros((b_pad, IN_PADDED), jnp.bfloat16)
    xp = xp.at[:B, :IN_FEATURES].set(x.astype(jnp.bfloat16))

    const = lambda i: (0, 0)
    out = pl.pallas_call(
        mlp_kernel,
        out_shape=jax.ShapeDtypeStruct((b_pad, 1), jnp.float32),
        grid=(num_tiles,),
        in_specs=[
            pl.BlockSpec((tile_b, IN_PADDED), lambda i: (i, 0)),  # x tile
            pl.BlockSpec((IN_PADDED, HIDDEN1), const),            # w1 resident
            pl.BlockSpec((1, HIDDEN1), const),                    # b1 resident
            pl.BlockSpec((HIDDEN1, HIDDEN2), const),              # w2 resident
            pl.BlockSpec((1, HIDDEN2), const),                    # b2 resident
            pl.BlockSpec((1, HIDDEN2), const),                    # w3 resident
            pl.BlockSpec((1, 1), const),                          # b3 resident
        ],
        out_specs=pl.BlockSpec((tile_b, 1), lambda i: (i, 0)),
        compiler_params=pltpu.CompilerParams(
            dimension_semantics=("parallel",)),
    )(xp, w1, b1, w2, b2, w3, b3)
    return out[:B]


def reference_forward(x, prepared):
    """Same math (same bf16 operand rounding, f32 accumulation) in plain JAX."""
    w1, b1, w2, b2, w3, b3 = prepared
    xp = jnp.zeros((x.shape[0], IN_PADDED), jnp.bfloat16)
    xp = xp.at[:, :IN_FEATURES].set(x.astype(jnp.bfloat16))
    h1 = jnp.maximum(jnp.dot(xp, w1, preferred_element_type=jnp.float32) + b1, 0.0)
    h2 = jnp.maximum(jnp.dot(h1.astype(jnp.bfloat16), w2,
                             preferred_element_type=jnp.float32) + b2, 0.0)
    return jnp.sum(h2 * w3, axis=-1, keepdims=True) + b3


if __name__ == "__main__":
    key = jax.random.PRNGKey(0)
    kx, kp = jax.random.split(key)
    B = 8
    x = jax.random.normal(kx, (B, IN_FEATURES), jnp.float32)
    params = init_params(kp)
    prepared = prepare_params(params)

    out = simple_linear_forward(x, prepared)
    out = jax.block_until_ready(out)

    ref = reference_forward(x, prepared)
    assert out.shape == (B, 1), out.shape
    assert jnp.allclose(out, ref, atol=1e-3, rtol=1e-3), float(
        jnp.max(jnp.abs(out - ref)))
    print("KERNEL_OK")
</pallas_src>

<mosaic_0001>
module attributes {stable_mosaic.version = 11 : i64} {
  func.func @mlp_kernel(%arg0: i32, %arg1: memref<8x512xbf16, #tpu.memory_space<vmem>>, %arg2: memref<512x512xbf16, #tpu.memory_space<vmem>>, %arg3: memref<1x512xf32, #tpu.memory_space<vmem>>, %arg4: memref<512x64xbf16, #tpu.memory_space<vmem>>, %arg5: memref<1x64xf32, #tpu.memory_space<vmem>>, %arg6: memref<1x64xf32, #tpu.memory_space<vmem>>, %arg7: memref<1x1xf32, #tpu.memory_space<vmem>>, %arg8: memref<8x1xf32, #tpu.memory_space<vmem>>) attributes {dimension_semantics = [#tpu.dimension_semantics<parallel>], iteration_bounds = array<i64: 1>, scalar_prefetch = 0 : i64, scratch_operands = 0 : i64, tpu.core_type = #tpu.core_type<tc>, window_params = [{transform_indices = @transform_0, window_bounds = array<i64: 8, 512>}, {pipeline_mode = #tpu.pipeline_mode<synchronous>, transform_indices = @transform_1, window_bounds = array<i64: 512, 512>}, {pipeline_mode = #tpu.pipeline_mode<synchronous>, transform_indices = @transform_2, window_bounds = array<i64: 1, 512>}, {pipeline_mode = #tpu.pipeline_mode<synchronous>, transform_indices = @transform_3, window_bounds = array<i64: 512, 64>}, {pipeline_mode = #tpu.pipeline_mode<synchronous>, transform_indices = @transform_4, window_bounds = array<i64: 1, 64>}, {pipeline_mode = #tpu.pipeline_mode<synchronous>, transform_indices = @transform_5, window_bounds = array<i64: 1, 64>}, {pipeline_mode = #tpu.pipeline_mode<synchronous>, transform_indices = @transform_6, window_bounds = array<i64: 1, 1>}, {transform_indices = @transform_7, window_bounds = array<i64: 8, 1>}]} {
    %c0 = arith.constant 0 : index
    %c0_0 = arith.constant 0 : index
    %0 = vector.load %arg1[%c0, %c0_0] : memref<8x512xbf16, #tpu.memory_space<vmem>>, vector<8x512xbf16>
    %c0_1 = arith.constant 0 : index
    %c0_2 = arith.constant 0 : index
    %1 = vector.load %arg2[%c0_1, %c0_2] : memref<512x512xbf16, #tpu.memory_space<vmem>>, vector<512x512xbf16>
    %cst = arith.constant dense<0.000000e+00> : vector<8x512xf32>
    %2 = tpu.matmul %0, %1, %cst {dimension_numbers = #tpu.dot_dimension_numbers<[1], [0], [0], [1], [0, 0, 1, 1], [], []>} : vector<8x512xbf16>, vector<512x512xbf16>, vector<8x512xf32> -> vector<8x512xf32>
    %c0_3 = arith.constant 0 : index
    %c0_4 = arith.constant 0 : index
    %3 = vector.load %arg3[%c0_3, %c0_4] : memref<1x512xf32, #tpu.memory_space<vmem>>, vector<1x512xf32>
    %4 = vector.broadcast %3 : vector<1x512xf32> to vector<8x512xf32>
    %5 = arith.addf %2, %4 : vector<8x512xf32>
    %cst_5 = arith.constant 0.000000e+00 : f32
    %6 = vector.broadcast %cst_5 : f32 to vector<8x512xf32>
    %7 = arith.maximumf %5, %6 : vector<8x512xf32>
    %8 = arith.truncf %7 : vector<8x512xf32> to vector<8x512xbf16>
    %c0_6 = arith.constant 0 : index
    %c0_7 = arith.constant 0 : index
    %9 = vector.load %arg4[%c0_6, %c0_7] : memref<512x64xbf16, #tpu.memory_space<vmem>>, vector<512x64xbf16>
    %cst_8 = arith.constant dense<0.000000e+00> : vector<8x64xf32>
    %10 = tpu.matmul %8, %9, %cst_8 {dimension_numbers = #tpu.dot_dimension_numbers<[1], [0], [0], [1], [0, 0, 1, 1], [], []>} : vector<8x512xbf16>, vector<512x64xbf16>, vector<8x64xf32> -> vector<8x64xf32>
    %c0_9 = arith.constant 0 : index
    %c0_10 = arith.constant 0 : index
    %11 = vector.load %arg5[%c0_9, %c0_10] : memref<1x64xf32, #tpu.memory_space<vmem>>, vector<1x64xf32>
    %12 = vector.broadcast %11 : vector<1x64xf32> to vector<8x64xf32>
    %13 = arith.addf %10, %12 : vector<8x64xf32>
    %cst_11 = arith.constant 0.000000e+00 : f32
    %14 = vector.broadcast %cst_11 : f32 to vector<8x64xf32>
    %15 = arith.maximumf %13, %14 : vector<8x64xf32>
    %c0_12 = arith.constant 0 : index
    %c0_13 = arith.constant 0 : index
    %16 = vector.load %arg6[%c0_12, %c0_13] : memref<1x64xf32, #tpu.memory_space<vmem>>, vector<1x64xf32>
    %17 = vector.broadcast %16 : vector<1x64xf32> to vector<8x64xf32>
    %18 = arith.mulf %15, %17 : vector<8x64xf32>
    %cst_14 = arith.constant dense<0.000000e+00> : vector<8xf32>
    %19 = vector.multi_reduction <add>, %18, %cst_14 [1] : vector<8x64xf32> to vector<8xf32>
    %20 = vector.shape_cast %19 : vector<8xf32> to vector<8x1xf32>
    %c0_15 = arith.constant 0 : index
    %c0_16 = arith.constant 0 : index
    %21 = vector.load %arg7[%c0_15, %c0_16] : memref<1x1xf32, #tpu.memory_space<vmem>>, vector<1x1xf32>
    %22 = vector.broadcast %21 : vector<1x1xf32> to vector<8x1xf32>
    %23 = arith.addf %20, %22 : vector<8x1xf32>
    %c0_17 = arith.constant 0 : index
    %c0_18 = arith.constant 0 : index
    %24 = vector.load %arg8[%c0_17, %c0_18] : memref<8x1xf32, #tpu.memory_space<vmem>>, vector<8x1xf32>
    tpu.vector_store %arg8[%c0_17, %c0_18], %23 {strides = array<i32>} : memref<8x1xf32, #tpu.memory_space<vmem>>, vector<8x1xf32>,
    return
  }
  func.func @transform_0(%arg0: i32) -> (i32, i32) {
    %c0_i32 = arith.constant 0 : i32
    %c0_i32_0 = arith.constant 0 : i32
    return %arg0, %c0_i32 : i32, i32
  }
  func.func @transform_1(%arg0: i32) -> (i32, i32) {
    %c0_i32 = arith.constant 0 : i32
    %c0_i32_0 = arith.constant 0 : i32
    %c0_i32_1 = arith.constant 0 : i32
    return %c0_i32, %c0_i32_0 : i32, i32
  }
  func.func @transform_2(%arg0: i32) -> (i32, i32) {
    %c0_i32 = arith.constant 0 : i32
    %c0_i32_0 = arith.constant 0 : i32
    %c0_i32_1 = arith.constant 0 : i32
    return %c0_i32, %c0_i32_0 : i32, i32
  }
  func.func @transform_3(%arg0: i32) -> (i32, i32) {
    %c0_i32 = arith.constant 0 : i32
    %c0_i32_0 = arith.constant 0 : i32
    %c0_i32_1 = arith.constant 0 : i32
    return %c0_i32, %c0_i32_0 : i32, i32
  }
  func.func @transform_4(%arg0: i32) -> (i32, i32) {
    %c0_i32 = arith.constant 0 : i32
    %c0_i32_0 = arith.constant 0 : i32
    %c0_i32_1 = arith.constant 0 : i32
    return %c0_i32, %c0_i32_0 : i32, i32
  }
  func.func @transform_5(%arg0: i32) -> (i32, i32) {
    %c0_i32 = arith.constant 0 : i32
    %c0_i32_0 = arith.constant 0 : i32
    %c0_i32_1 = arith.constant 0 : i32
    return %c0_i32, %c0_i32_0 : i32, i32
  }
  func.func @transform_6(%arg0: i32) -> (i32, i32) {
    %c0_i32 = arith.constant 0 : i32
    %c0_i32_0 = arith.constant 0 : i32
    %c0_i32_1 = arith.constant 0 : i32
    return %c0_i32, %c0_i32_0 : i32, i32
  }
  func.func @transform_7(%arg0: i32) -> (i32, i32) {
    %c0_i32 = arith.constant 0 : i32
    %c0_i32_0 = arith.constant 0 : i32
    return %arg0, %c0_i32 : i32, i32
  }
}

</mosaic_0001>

<llo_original>
// kernel: tpu_custom_call.1
$region0: #{tpu_custom_call.1}
  #allocation0 [shape = 'u32[]', space=smem, size = 0x4, offset = 0x4, fixed_abs, tag = 'smem constant byte address 0x4 - core index']
  #allocation1 [shape = 'u32[144,128]{1,0:T(1,128)}', space=vmem, size = 0x12000, scoped, tag = 'internal scratch']
  #allocation2 [shape = 'f32[1,1]{1,0:T(1,128)S(1)}', space=vmem, size = 0x200, scoped, tag = 'scoped memory for tpu_custom_call.1']
  %s0 = inlined_call_operand.vmem [shape: bf16[8,512], index: 0, kind: input, shape index: {}]
  %s1 = inlined_call_operand.hbm [shape: bf16[512,512], index: 1, kind: input, shape index: {}]
  %s2 = inlined_call_operand.vmem [shape: f32[1,512], index: 2, kind: input, shape index: {}]
  %s3 = inlined_call_operand.vmem [shape: bf16[512,64], index: 3, kind: input, shape index: {}]
  %s4 = inlined_call_operand.vmem [shape: f32[1,64], index: 4, kind: input, shape index: {}]
  %s5 = inlined_call_operand.vmem [shape: f32[1,64], index: 5, kind: input, shape index: {}]
  %s6 = inlined_call_operand.<no memory space> [shape: f32[1,1], index: 6, kind: input, shape index: {}]
  %s7 = inlined_call_operand.vmem [shape: f32[8,1], index: 7, kind: output, shape index: {}]
  %s8 = sld [smem:[#allocation0]]
  $region42: #{tpu_custom_call.1} parent=0
    _
  %s10 = ssub.s32 1, %s8
  %s11 = scalar_select 0, %s10, %s8
  %v12 = vstv %s6
  %13 = vst [vmem:[#allocation2] sm:$0x1] %v12
  $region1: #{tpu_custom_call.1} parent=0
    #allocation3 [shape = 'u8[524288]{0}', space=vmem, size = 0x80000, scoped, tag = 'input window, operand 1, single buffered']
    #allocation4 [shape = 's32[1]{0}', space=sflag, size = 0x4, scoped, tag = 'scoped memory for tpu_custom_call.1']
    %14 = vsyncpa [#allocation4], 0
    // Predicated region
    $region2: #{tpu_custom_call.1} parent=1 // pred_check
      _
    $region3: #{tpu_custom_call.1} parent=1 // pred_check_branch
      %16 = sbr.rel (0) target = $region5
    $region4: #{tpu_custom_call.1} parent=1 // pred_region
      _
    $region5: #{tpu_custom_call.1} parent=1 // pred_fallthru
      _
    // Predicated region
    $region6: #{tpu_custom_call.1} parent=1 // pred_check
      _
    $region7: #{tpu_custom_call.1} parent=1 // pred_check_branch
      %18 = sbr.rel (0) target = $region9
    $region8: #{tpu_custom_call.1} parent=1 // pred_region
      %s20 = ssub.s32 16384, 16384
      %21 = vsyncadd [#allocation4], %s20
      %s22 = sshll.u32 [#allocation3], 4
      %s23 = int_to_ptr.vmem [resolvable:$true] %s22
      %28 = dma.hbm_to_vmem [thread:$0]  %s1, 16384, %s23, [#allocation4], 256, 256, 16
    $region9: #{tpu_custom_call.1} parent=1 // pred_fallthru
      _
    // Predicated region
    $region10: #{tpu_custom_call.1} parent=1 // pred_check
      _
    $region11: #{tpu_custom_call.1} parent=1 // pred_check_branch
      %30 = sbr.rel (0) target = $region13
    $region12: #{tpu_custom_call.1} parent=1 // pred_region
      _
    $region13: #{tpu_custom_call.1} parent=1 // pred_fallthru
      _
    // Predicated region
    $region14: #{tpu_custom_call.1} parent=1 // pred_check
      _
    $region15: #{tpu_custom_call.1} parent=1 // pred_check_branch
      %32 = sbr.rel (0) target = $region17
    $region16: #{tpu_custom_call.1} parent=1 // pred_region
      _
    $region17: #{tpu_custom_call.1} parent=1 // pred_fallthru
      _
    // Predicated region
    $region18: #{tpu_custom_call.1} parent=1 // pred_check
      _
    $region19: #{tpu_custom_call.1} parent=1 // pred_check_branch
      %34 = sbr.rel (0) target = $region21
    $region20: #{tpu_custom_call.1} parent=1 // pred_region
      _
    $region21: #{tpu_custom_call.1} parent=1 // pred_fallthru
      _
    // Predicated region
    $region22: #{tpu_custom_call.1} parent=1 // pred_check
      _
    $region23: #{tpu_custom_call.1} parent=1 // pred_check_branch
      %36 = sbr.rel (0) target = $region25
    $region24: #{tpu_custom_call.1} parent=1 // pred_region
      _
    $region25: #{tpu_custom_call.1} parent=1 // pred_fallthru
      _
    // Predicated region
    $region26: #{tpu_custom_call.1} parent=1 // pred_check
      _
    $region27: #{tpu_custom_call.1} parent=1 // pred_check_branch
      %38 = sbr.rel (0) target = $region29
    $region28: #{tpu_custom_call.1} parent=1 // pred_region
      _
    $region29: #{tpu_custom_call.1} parent=1 // pred_fallthru
      _
    // Predicated region
    $region30: #{tpu_custom_call.1} parent=1 // pred_check
      _
    $region31: #{tpu_custom_call.1} parent=1 // pred_check_branch
      %40 = sbr.rel (0) target = $region33
    $region32: #{tpu_custom_call.1} parent=1 // pred_region
      %41 = dma.done [#allocation4], 16384
    $region33: #{tpu_custom_call.1} parent=1 // pred_fallthru
      _
    %v43 = vld [vmem:[%s0] sm:$0xff]
    %v44 = vld [vmem:[%s0 + $0x8] sm:$0xff]
    %v45 = vld [vmem:[#allocation3] sm:$0xff]
    %v46 = vld [vmem:[#allocation3 + $0x8] sm:$0xff]
    %v47 = vld [vmem:[#allocation3 + $0x10] sm:$0xff]
    %v48 = vld [vmem:[#allocation3 + $0x18] sm:$0xff]
    %v49 = vld [vmem:[#allocation3 + $0x20] sm:$0xff]
    %v50 = vld [vmem:[#allocation3 + $0x28] sm:$0xff]
    %v51 = vld [vmem:[#allocation3 + $0x30] sm:$0xff]
    %v52 = vld [vmem:[#allocation3 + $0x38] sm:$0xff]
    %v53 = vld [vmem:[#allocation3 + $0x40] sm:$0xff]
    %v54 = vld [vmem:[#allocation3 + $0x48] sm:$0xff]
    %v55 = vld [vmem:[#allocation3 + $0x50] sm:$0xff]
    %v56 = vld [vmem:[#allocation3 + $0x58] sm:$0xff]
    %v57 = vld [vmem:[#allocation3 + $0x60] sm:$0xff]
    %v58 = vld [vmem:[#allocation3 + $0x68] sm:$0xff]
    %v59 = vld [vmem:[#allocation3 + $0x70] sm:$0xff]
    %v60 = vld [vmem:[#allocation3 + $0x78] sm:$0xff]
    %v61 = vld [vmem:[#allocation3 + $0x80] sm:$0xff]
    %v62 = vld [vmem:[#allocation3 + $0x88] sm:$0xff]
    %v63 = vld [vmem:[#allocation3 + $0x90] sm:$0xff]
    %v64 = vld [vmem:[#allocation3 + $0x98] sm:$0xff]
    %v65 = vld [vmem:[#allocation3 + $0xa0] sm:$0xff]
    %v66 = vld [vmem:[#allocation3 + $0xa8] sm:$0xff]
    %v67 = vld [vmem:[#allocation3 + $0xb0] sm:$0xff]
    %v68 = vld [vmem:[#allocation3 + $0xb8] sm:$0xff]
    %v69 = vld [vmem:[#allocation3 + $0xc0] sm:$0xff]
    %v70 = vld [vmem:[#allocation3 + $0xc8] sm:$0xff]
    %v71 = vld [vmem:[#allocation3 + $0xd0] sm:$0xff]
    %v72 = vld [vmem:[#allocation3 + $0xd8] sm:$0xff]
    %v73 = vld [vmem:[#allocation3 + $0xe0] sm:$0xff]
    %v74 = vld [vmem:[#allocation3 + $0xe8] sm:$0xff]
    %v75 = vld [vmem:[#allocation3 + $0xf0] sm:$0xff]
    %v76 = vld [vmem:[#allocation3 + $0xf8] sm:$0xff]
    %v77 = vld [vmem:[#allocation3 + $0x100] sm:$0xff]
    %v78 = vld [vmem:[#allocation3 + $0x108] sm:$0xff]
    %v79 = vld [vmem:[#allocation3 + $0x110] sm:$0xff]
    %v80 = vld [vmem:[#allocation3 + $0x118] sm:$0xff]
    %v81 = vld [vmem:[#allocation3 + $0x120] sm:$0xff]
    %v82 = vld [vmem:[#allocation3 + $0x128] sm:$0xff]
    %v83 = vld [vmem:[#allocation3 + $0x130] sm:$0xff]
    %v84 = vld [vmem:[#allocation3 + $0x138] sm:$0xff]
    %v85 = vld [vmem:[#allocation3 + $0x140] sm:$0xff]
    %v86 = vld [vmem:[#allocation3 + $0x148] sm:$0xff]
    %v87 = vld [vmem:[#allocation3 + $0x150] sm:$0xff]
    %v88 = vld [vmem:[#allocation3 + $0x158] sm:$0xff]
    %v89 = vld [vmem:[#allocation3 + $0x160] sm:$0xff]
    %v90 = vld [vmem:[#allocation3 + $0x168] sm:$0xff]
    %v91 = vld [vmem:[#allocation3 + $0x170] sm:$0xff]
    %v92 = vld [vmem:[#allocation3 + $0x178] sm:$0xff]
    %v93 = vld [vmem:[#allocation3 + $0x180] sm:$0xff]
    %v94 = vld [vmem:[#allocation3 + $0x188] sm:$0xff]
    %v95 = vld [vmem:[#allocation3 + $0x190] sm:$0xff]
    %v96 = vld [vmem:[#allocation3 + $0x198] sm:$0xff]
    %v97 = vld [vmem:[#allocation3 + $0x1a0] sm:$0xff]
    %v98 = vld [vmem:[#allocation3 + $0x1a8] sm:$0xff]
    %v99 = vld [vmem:[#allocation3 + $0x1b0] sm:$0xff]
    %v100 = vld [vmem:[#allocation3 + $0x1b8] sm:$0xff]
    %v101 = vld [vmem:[#allocation3 + $0x1c0] sm:$0xff]
    %v102 = vld [vmem:[#allocation3 + $0x1c8] sm:$0xff]
    %v103 = vld [vmem:[#allocation3 + $0x1d0] sm:$0xff]
    %v104 = vld [vmem:[#allocation3 + $0x1d8] sm:$0xff]
    %v105 = vld [vmem:[#allocation3 + $0x1e0] sm:$0xff]
    %v106 = vld [vmem:[#allocation3 + $0x1e8] sm:$0xff]
    %v107 = vld [vmem:[#allocation3 + $0x1f0] sm:$0xff]
    %v108 = vld [vmem:[#allocation3 + $0x1f8] sm:$0xff]
    %v109 = vld [vmem:[#allocation3 + $0x200] sm:$0xff]
    %v110 = vld [vmem:[#allocation3 + $0x208] sm:$0xff]
    %v111 = vld [vmem:[#allocation3 + $0x210] sm:$0xff]
    %v112 = vld [vmem:[#allocation3 + $0x218] sm:$0xff]
    %v113 = vld [vmem:[#allocation3 + $0x220] sm:$0xff]
    %v114 = vld [vmem:[#allocation3 + $0x228] sm:$0xff]
    %v115 = vld [vmem:[#allocation3 + $0x230] sm:$0xff]
    %v116 = vld [vmem:[#allocation3 + $0x238] sm:$0xff]
    %v117 = vld [vmem:[#allocation3 + $0x240] sm:$0xff]
    %v118 = vld [vmem:[#allocation3 + $0x248] sm:$0xff]
    %v119 = vld [vmem:[#allocation3 + $0x250] sm:$0xff]
    %v120 = vld [vmem:[#allocation3 + $0x258] sm:$0xff]
    %v121 = vld [vmem:[#allocation3 + $0x260] sm:$0xff]
    %v122 = vld [vmem:[#allocation3 + $0x268] sm:$0xff]
    %v123 = vld [vmem:[#allocation3 + $0x270] sm:$0xff]
    %v124 = vld [vmem:[#allocation3 + $0x278] sm:$0xff]
    %v125 = vld [vmem:[#allocation3 + $0x280] sm:$0xff]
    %v126 = vld [vmem:[#allocation3 + $0x288] sm:$0xff]
    %v127 = vld [vmem:[#allocation3 + $0x290] sm:$0xff]
    %v128 = vld [vmem:[#allocation3 + $0x298] sm:$0xff]
    %v129 = vld [vmem:[#allocation3 + $0x2a0] sm:$0xff]
    %v130 = vld [vmem:[#allocation3 + $0x2a8] sm:$0xff]
    %v131 = vld [vmem:[#allocation3 + $0x2b0] sm:$0xff]
    %v132 = vld [vmem:[#allocation3 + $0x2b8] sm:$0xff]
    %v133 = vld [vmem:[#allocation3 + $0x2c0] sm:$0xff]
    %v134 = vld [vmem:[#allocation3 + $0x2c8] sm:$0xff]
    %v135 = vld [vmem:[#allocation3 + $0x2d0] sm:$0xff]
    %v136 = vld [vmem:[#allocation3 + $0x2d8] sm:$0xff]
    %v137 = vld [vmem:[#allocation3 + $0x2e0] sm:$0xff]
    %v138 = vld [vmem:[#allocation3 + $0x2e8] sm:$0xff]
    %v139 = vld [vmem:[#allocation3 + $0x2f0] sm:$0xff]
    %v140 = vld [vmem:[#allocation3 + $0x2f8] sm:$0xff]
    %v141 = vld [vmem:[#allocation3 + $0x300] sm:$0xff]
    %v142 = vld [vmem:[#allocation3 + $0x308] sm:$0xff]
    %v143 = vld [vmem:[#allocation3 + $0x310] sm:$0xff]
    %v144 = vld [vmem:[#allocation3 + $0x318] sm:$0xff]
    %v145 = vld [vmem:[#allocation3 + $0x320] sm:$0xff]
    %v146 = vld [vmem:[#allocation3 + $0x328] sm:$0xff]
    %v147 = vld [vmem:[#allocation3 + $0x330] sm:$0xff]
    %v148 = vld [vmem:[#allocation3 + $0x338] sm:$0xff]
    %v149 = vld [vmem:[#allocation3 + $0x340] sm:$0xff]
    %v150 = vld [vmem:[#allocation3 + $0x348] sm:$0xff]
    %v151 = vld [vmem:[#allocation3 + $0x350] sm:$0xff]
    %v152 = vld [vmem:[#allocation3 + $0x358] sm:$0xff]
    %v153 = vld [vmem:[#allocation3 + $0x360] sm:$0xff]
    %v154 = vld [vmem:[#allocation3 + $0x368] sm:$0xff]
    %v155 = vld [vmem:[#allocation3 + $0x370] sm:$0xff]
    %v156 = vld [vmem:[#allocation3 + $0x378] sm:$0xff]
    %v157 = vld [vmem:[#allocation3 + $0x380] sm:$0xff]
    %v158 = vld [vmem:[#allocation3 + $0x388] sm:$0xff]
    %v159 = vld [vmem:[#allocation3 + $0x390] sm:$0xff]
    %v160 = vld [vmem:[#allocation3 + $0x398] sm:$0xff]
    %v161 = vld [vmem:[#allocation3 + $0x3a0] sm:$0xff]
    %v162 = vld [vmem:[#allocation3 + $0x3a8] sm:$0xff]
    %v163 = vld [vmem:[#allocation3 + $0x3b0] sm:$0xff]
    %v164 = vld [vmem:[#allocation3 + $0x3b8] sm:$0xff]
    %v165 = vld [vmem:[#allocation3 + $0x3c0] sm:$0xff]
    %v166 = vld [vmem:[#allocation3 + $0x3c8] sm:$0xff]
    %v167 = vld [vmem:[#allocation3 + $0x3d0] sm:$0xff]
    %v168 = vld [vmem:[#allocation3 + $0x3d8] sm:$0xff]
    %v169 = vld [vmem:[#allocation3 + $0x3e0] sm:$0xff]
    %v170 = vld [vmem:[#allocation3 + $0x3e8] sm:$0xff]
    %v171 = vld [vmem:[#allocation3 + $0x3f0] sm:$0xff]
    %v172 = vld [vmem:[#allocation3 + $0x3f8] sm:$0xff]
    %v173 = vld [vmem:[%s2] sm:$0xf]
    %v175 = vlaneseq
    %v176 = vshrl.u32 %v175, 7
    %v177 = vsub.s32 0, %v176
    %v178 = vrot.slane %v173, %v177
    %v179 = vlaneseq
    %v180 = vshrl.u32 %v179, 7
    %v181 = vsub.s32 1, %v180
    %v182 = vrot.slane %v173, %v181
    %v183 = vlaneseq
    %v184 = vshrl.u32 %v183, 7
    %v185 = vsub.s32 2, %v184
    %v186 = vrot.slane %v173, %v185
    %v187 = vlaneseq
    %v188 = vshrl.u32 %v187, 7
    %v189 = vsub.s32 3, %v188
    %v190 = vrot.slane %v173, %v189
    %v197 = vunpack.c.l.b16 %v43
    %v198 = vunpack.c.h.b16 %v43
    %v199 = vunpack.c.l.b16 %v44
    %v200 = vunpack.c.h.b16 %v44
    %v201 = vpack.c.b16 %v197, %v197
    %v202 = vpack.c.b16 %v198, %v198
    %v203 = vpack.c.b16 %v199, %v199
    %v204 = vpack.c.b16 %v200, %v200
    %v337 = vunpack.c.l.b16 %v45
    %v338 = vunpack.c.h.b16 %v45
    %v339 = vunpack.c.l.b16 %v46
    %v340 = vunpack.c.h.b16 %v46
    %v341 = vunpack.c.l.b16 %v47
    %v342 = vunpack.c.h.b16 %v47
    %v343 = vunpack.c.l.b16 %v48
    %v344 = vunpack.c.h.b16 %v48
    %v345 = vunpack.c.l.b16 %v49
    %v346 = vunpack.c.h.b16 %v49
    %v347 = vunpack.c.l.b16 %v50
    %v348 = vunpack.c.h.b16 %v50
    %v349 = vunpack.c.l.b16 %v51
    %v350 = vunpack.c.h.b16 %v51
    %v351 = vunpack.c.l.b16 %v52
    %v352 = vunpack.c.h.b16 %v52
    %v353 = vunpack.c.l.b16 %v53
    %v354 = vunpack.c.h.b16 %v53
    %v355 = vunpack.c.l.b16 %v54
    %v356 = vunpack.c.h.b16 %v54
    %v357 = vunpack.c.l.b16 %v55
    %v358 = vunpack.c.h.b16 %v55
    %v359 = vunpack.c.l.b16 %v56
    %v360 = vunpack.c.h.b16 %v56
    %v361 = vunpack.c.l.b16 %v57
    %v362 = vunpack.c.h.b16 %v57
    %v363 = vunpack.c.l.b16 %v58
    %v364 = vunpack.c.h.b16 %v58
    %v365 = vunpack.c.l.b16 %v59
    %v366 = vunpack.c.h.b16 %v59
    %v367 = vunpack.c.l.b16 %v60
    %v368 = vunpack.c.h.b16 %v60
    %v369 = vunpack.c.l.b16 %v61
    %v370 = vunpack.c.h.b16 %v61
    %v371 = vunpack.c.l.b16 %v62
    %v372 = vunpack.c.h.b16 %v62
    %v373 = vunpack.c.l.b16 %v63
    %v374 = vunpack.c.h.b16 %v63
    %v375 = vunpack.c.l.b16 %v64
    %v376 = vunpack.c.h.b16 %v64
    %v377 = vunpack.c.l.b16 %v65
    %v378 = vunpack.c.h.b16 %v65
    %v379 = vunpack.c.l.b16 %v66
    %v380 = vunpack.c.h.b16 %v66
    %v381 = vunpack.c.l.b16 %v67
    %v382 = vunpack.c.h.b16 %v67
    %v383 = vunpack.c.l.b16 %v68
    %v384 = vunpack.c.h.b16 %v68
    %v385 = vunpack.c.l.b16 %v69
    %v386 = vunpack.c.h.b16 %v69
    %v387 = vunpack.c.l.b16 %v70
    %v388 = vunpack.c.h.b16 %v70
    %v389 = vunpack.c.l.b16 %v71
    %v390 = vunpack.c.h.b16 %v71
    %v391 = vunpack.c.l.b16 %v72
    %v392 = vunpack.c.h.b16 %v72
    %v393 = vunpack.c.l.b16 %v73
    %v394 = vunpack.c.h.b16 %v73
    %v395 = vunpack.c.l.b16 %v74
    %v396 = vunpack.c.h.b16 %v74
    %v397 = vunpack.c.l.b16 %v75
    %v398 = vunpack.c.h.b16 %v75
    %v399 = vunpack.c.l.b16 %v76
    %v400 = vunpack.c.h.b16 %v76
    %v401 = vunpack.c.l.b16 %v77
    %v402 = vunpack.c.h.b16 %v77
    %v403 = vunpack.c.l.b16 %v78
    %v404 = vunpack.c.h.b16 %v78
    %v405 = vunpack.c.l.b16 %v79
    %v406 = vunpack.c.h.b16 %v79
    %v407 = vunpack.c.l.b16 %v80
    %v408 = vunpack.c.h.b16 %v80
    %v409 = vunpack.c.l.b16 %v81
    %v410 = vunpack.c.h.b16 %v81
    %v411 = vunpack.c.l.b16 %v82
    %v412 = vunpack.c.h.b16 %v82
    %v413 = vunpack.c.l.b16 %v83
    %v414 = vunpack.c.h.b16 %v83
    %v415 = vunpack.c.l.b16 %v84
    %v416 = vunpack.c.h.b16 %v84
    %v417 = vunpack.c.l.b16 %v85
    %v418 = vunpack.c.h.b16 %v85
    %v419 = vunpack.c.l.b16 %v86
    %v420 = vunpack.c.h.b16 %v86
    %v421 = vunpack.c.l.b16 %v87
    %v422 = vunpack.c.h.b16 %v87
    %v423 = vunpack.c.l.b16 %v88
    %v424 = vunpack.c.h.b16 %v88
    %v425 = vunpack.c.l.b16 %v89
    %v426 = vunpack.c.h.b16 %v89
    %v427 = vunpack.c.l.b16 %v90
    %v428 = vunpack.c.h.b16 %v90
    %v429 = vunpack.c.l.b16 %v91
    %v430 = vunpack.c.h.b16 %v91
    %v431 = vunpack.c.l.b16 %v92
    %v432 = vunpack.c.h.b16 %v92
    %v433 = vunpack.c.l.b16 %v93
    %v434 = vunpack.c.h.b16 %v93
    %v435 = vunpack.c.l.b16 %v94
    %v436 = vunpack.c.h.b16 %v94
    %v437 = vunpack.c.l.b16 %v95
    %v438 = vunpack.c.h.b16 %v95
    %v439 = vunpack.c.l.b16 %v96
    %v440 = vunpack.c.h.b16 %v96
    %v441 = vunpack.c.l.b16 %v97
    %v442 = vunpack.c.h.b16 %v97
    %v443 = vunpack.c.l.b16 %v98
    %v444 = vunpack.c.h.b16 %v98
    %v445 = vunpack.c.l.b16 %v99
    %v446 = vunpack.c.h.b16 %v99
    %v447 = vunpack.c.l.b16 %v100
    %v448 = vunpack.c.h.b16 %v100
    %v449 = vunpack.c.l.b16 %v101
    %v450 = vunpack.c.h.b16 %v101
    %v451 = vunpack.c.l.b16 %v102
    %v452 = vunpack.c.h.b16 %v102
    %v453 = vunpack.c.l.b16 %v103
    %v454 = vunpack.c.h.b16 %v103
    %v455 = vunpack.c.l.b16 %v104
    %v456 = vunpack.c.h.b16 %v104
    %v457 = vunpack.c.l.b16 %v105
    %v458 = vunpack.c.h.b16 %v105
    %v459 = vunpack.c.l.b16 %v106
    %v460 = vunpack.c.h.b16 %v106
    %v461 = vunpack.c.l.b16 %v107
    %v462 = vunpack.c.h.b16 %v107
    %v463 = vunpack.c.l.b16 %v108
    %v464 = vunpack.c.h.b16 %v108
    %v465 = vunpack.c.l.b16 %v109
    %v466 = vunpack.c.h.b16 %v109
    %v467 = vunpack.c.l.b16 %v110
    %v468 = vunpack.c.h.b16 %v110
    %v469 = vunpack.c.l.b16 %v111
    %v470 = vunpack.c.h.b16 %v111
    %v471 = vunpack.c.l.b16 %v112
    %v472 = vunpack.c.h.b16 %v112
    %v473 = vunpack.c.l.b16 %v113
    %v474 = vunpack.c.h.b16 %v113
    %v475 = vunpack.c.l.b16 %v114
    %v476 = vunpack.c.h.b16 %v114
    %v477 = vunpack.c.l.b16 %v115
    %v478 = vunpack.c.h.b16 %v115
    %v479 = vunpack.c.l.b16 %v116
    %v480 = vunpack.c.h.b16 %v116
    %v481 = vunpack.c.l.b16 %v117
    %v482 = vunpack.c.h.b16 %v117
    %v483 = vunpack.c.l.b16 %v118
    %v484 = vunpack.c.h.b16 %v118
    %v485 = vunpack.c.l.b16 %v119
    %v486 = vunpack.c.h.b16 %v119
    %v487 = vunpack.c.l.b16 %v120
    %v488 = vunpack.c.h.b16 %v120
    %v489 = vunpack.c.l.b16 %v121
    %v490 = vunpack.c.h.b16 %v121
    %v491 = vunpack.c.l.b16 %v122
    %v492 = vunpack.c.h.b16 %v122
    %v493 = vunpack.c.l.b16 %v123
    %v494 = vunpack.c.h.b16 %v123
    %v495 = vunpack.c.l.b16 %v124
    %v496 = vunpack.c.h.b16 %v124
    %v497 = vunpack.c.l.b16 %v125
    %v498 = vunpack.c.h.b16 %v125
    %v499 = vunpack.c.l.b16 %v126
    %v500 = vunpack.c.h.b16 %v126
    %v501 = vunpack.c.l.b16 %v127
    %v502 = vunpack.c.h.b16 %v127
    %v503 = vunpack.c.l.b16 %v128
    %v504 = vunpack.c.h.b16 %v128
    %v505 = vunpack.c.l.b16 %v129
    %v506 = vunpack.c.h.b16 %v129
    %v507 = vunpack.c.l.b16 %v130
    %v508 = vunpack.c.h.b16 %v130
    %v509 = vunpack.c.l.b16 %v131
    %v510 = vunpack.c.h.b16 %v131
    %v511 = vunpack.c.l.b16 %v132
    %v512 = vunpack.c.h.b16 %v132
    %v513 = vunpack.c.l.b16 %v133
    %v514 = vunpack.c.h.b16 %v133
    %v515 = vunpack.c.l.b16 %v134
    %v516 = vunpack.c.h.b16 %v134
    %v517 = vunpack.c.l.b16 %v135
    %v518 = vunpack.c.h.b16 %v135
    %v519 = vunpack.c.l.b16 %v136
    %v520 = vunpack.c.h.b16 %v136
    %v521 = vunpack.c.l.b16 %v137
    %v522 = vunpack.c.h.b16 %v137
    %v523 = vunpack.c.l.b16 %v138
    %v524 = vunpack.c.h.b16 %v138
    %v525 = vunpack.c.l.b16 %v139
    %v526 = vunpack.c.h.b16 %v139
    %v527 = vunpack.c.l.b16 %v140
    %v528 = vunpack.c.h.b16 %v140
    %v529 = vunpack.c.l.b16 %v141
    %v530 = vunpack.c.h.b16 %v141
    %v531 = vunpack.c.l.b16 %v142
    %v532 = vunpack.c.h.b16 %v142
    %v533 = vunpack.c.l.b16 %v143
    %v534 = vunpack.c.h.b16 %v143
    %v535 = vunpack.c.l.b16 %v144
    %v536 = vunpack.c.h.b16 %v144
    %v537 = vunpack.c.l.b16 %v145
    %v538 = vunpack.c.h.b16 %v145
    %v539 = vunpack.c.l.b16 %v146
    %v540 = vunpack.c.h.b16 %v146
    %v541 = vunpack.c.l.b16 %v147
    %v542 = vunpack.c.h.b16 %v147
    %v543 = vunpack.c.l.b16 %v148
    %v544 = vunpack.c.h.b16 %v148
    %v545 = vunpack.c.l.b16 %v149
    %v546 = vunpack.c.h.b16 %v149
    %v547 = vunpack.c.l.b16 %v150
    %v548 = vunpack.c.h.b16 %v150
    %v549 = vunpack.c.l.b16 %v151
    %v550 = vunpack.c.h.b16 %v151
    %v551 = vunpack.c.l.b16 %v152
    %v552 = vunpack.c.h.b16 %v152
    %v553 = vunpack.c.l.b16 %v153
    %v554 = vunpack.c.h.b16 %v153
    %v555 = vunpack.c.l.b16 %v154
    %v556 = vunpack.c.h.b16 %v154
    %v557 = vunpack.c.l.b16 %v155
    %v558 = vunpack.c.h.b16 %v155
    %v559 = vunpack.c.l.b16 %v156
    %v560 = vunpack.c.h.b16 %v156
    %v561 = vunpack.c.l.b16 %v157
    %v562 = vunpack.c.h.b16 %v157
    %v563 = vunpack.c.l.b16 %v158
    %v564 = vunpack.c.h.b16 %v158
    %v565 = vunpack.c.l.b16 %v159
    %v566 = vunpack.c.h.b16 %v159
    %v567 = vunpack.c.l.b16 %v160
    %v568 = vunpack.c.h.b16 %v160
    %v569 = vunpack.c.l.b16 %v161
    %v570 = vunpack.c.h.b16 %v161
    %v571 = vunpack.c.l.b16 %v162
    %v572 = vunpack.c.h.b16 %v162
    %v573 = vunpack.c.l.b16 %v163
    %v574 = vunpack.c.h.b16 %v163
    %v575 = vunpack.c.l.b16 %v164
    %v576 = vunpack.c.h.b16 %v164
    %v577 = vunpack.c.l.b16 %v165
    %v578 = vunpack.c.h.b16 %v165
    %v579 = vunpack.c.l.b16 %v166
    %v580 = vunpack.c.h.b16 %v166
    %v581 = vunpack.c.l.b16 %v167
    %v582 = vunpack.c.h.b16 %v167
    %v583 = vunpack.c.l.b16 %v168
    %v584 = vunpack.c.h.b16 %v168
    %v585 = vunpack.c.l.b16 %v169
    %v586 = vunpack.c.h.b16 %v169
    %v587 = vunpack.c.l.b16 %v170
    %v588 = vunpack.c.h.b16 %v170
    %v589 = vunpack.c.l.b16 %v171
    %v590 = vunpack.c.h.b16 %v171
    %v591 = vunpack.c.l.b16 %v172
    %v592 = vunpack.c.h.b16 %v172
    %v593 = vpack.c.b16 %v341, %v337
    %v594 = vpack.c.b16 %v342, %v338
    %v595 = vpack.c.b16 %v343, %v339
    %v596 = vpack.c.b16 %v344, %v340
    %v597 = vpack.c.b16 %v349, %v345
    %v598 = vpack.c.b16 %v350, %v346
    %v599 = vpack.c.b16 %v351, %v347
    %v600 = vpack.c.b16 %v352, %v348
    %v601 = vpack.c.b16 %v357, %v353
    %v602 = vpack.c.b16 %v358, %v354
    %v603 = vpack.c.b16 %v359, %v355
    %v604 = vpack.c.b16 %v360, %v356
    %v605 = vpack.c.b16 %v365, %v361
    %v606 = vpack.c.b16 %v366, %v362
    %v607 = vpack.c.b16 %v367, %v363
    %v608 = vpack.c.b16 %v368, %v364
    %v609 = vpack.c.b16 %v373, %v369
    %v610 = vpack.c.b16 %v374, %v370
    %v611 = vpack.c.b16 %v375, %v371
    %v612 = vpack.c.b16 %v376, %v372
    %v613 = vpack.c.b16 %v381, %v377
    %v614 = vpack.c.b16 %v382, %v378
    %v615 = vpack.c.b16 %v383, %v379
    %v616 = vpack.c.b16 %v384, %v380
    %v617 = vpack.c.b16 %v389, %v385
    %v618 = vpack.c.b16 %v390, %v386
    %v619 = vpack.c.b16 %v391, %v387
    %v620 = vpack.c.b16 %v392, %v388
    %v621 = vpack.c.b16 %v397, %v393
    %v622 = vpack.c.b16 %v398, %v394
    %v623 = vpack.c.b16 %v399, %v395
    %v624 = vpack.c.b16 %v400, %v396
    %v625 = vpack.c.b16 %v405, %v401
    %v626 = vpack.c.b16 %v406, %v402
    %v627 = vpack.c.b16 %v407, %v403
    %v628 = vpack.c.b16 %v408, %v404
    %v629 = vpack.c.b16 %v413, %v409
    %v630 = vpack.c.b16 %v414, %v410
    %v631 = vpack.c.b16 %v415, %v411
    %v632 = vpack.c.b16 %v416, %v412
    %v633 = vpack.c.b16 %v421, %v417
    %v634 = vpack.c.b16 %v422, %v418
    %v635 = vpack.c.b16 %v423, %v419
    %v636 = vpack.c.b16 %v424, %v420
    %v637 = vpack.c.b16 %v429, %v425
    %v638 = vpack.c.b16 %v430, %v426
    %v639 = vpack.c.b16 %v431, %v427
    %v640 = vpack.c.b16 %v432, %v428
    %v641 = vpack.c.b16 %v437, %v433
    %v642 = vpack.c.b16 %v438, %v434
    %v643 = vpack.c.b16 %v439, %v435
    %v644 = vpack.c.b16 %v440, %v436
    %v645 = vpack.c.b16 %v445, %v441
    %v646 = vpack.c.b16 %v446, %v442
    %v647 = vpack.c.b16 %v447, %v443
    %v648 = vpack.c.b16 %v448, %v444
    %v649 = vpack.c.b16 %v453, %v449
    %v650 = vpack.c.b16 %v454, %v450
    %v651 = vpack.c.b16 %v455, %v451
    %v652 = vpack.c.b16 %v456, %v452
    %v653 = vpack.c.b16 %v461, %v457
    %v654 = vpack.c.b16 %v462, %v458
    %v655 = vpack.c.b16 %v463, %v459
    %v656 = vpack.c.b16 %v464, %v460
    %v657 = vpack.c.b16 %v469, %v465
    %v658 = vpack.c.b16 %v470, %v466
    %v659 = vpack.c.b16 %v471, %v467
    %v660 = vpack.c.b16 %v472, %v468
    %v661 = vpack.c.b16 %v477, %v473
    %v662 = vpack.c.b16 %v478, %v474
    %v663 = vpack.c.b16 %v479, %v475
    %v664 = vpack.c.b16 %v480, %v476
    %v665 = vpack.c.b16 %v485, %v481
    %v666 = vpack.c.b16 %v486, %v482
    %v667 = vpack.c.b16 %v487, %v483
    %v668 = vpack.c.b16 %v488, %v484
    %v669 = vpack.c.b16 %v493, %v489
    %v670 = vpack.c.b16 %v494, %v490
    %v671 = vpack.c.b16 %v495, %v491
    %v672 = vpack.c.b16 %v496, %v492
    %v673 = vpack.c.b16 %v501, %v497
    %v674 = vpack.c.b16 %v502, %v498
    %v675 = vpack.c.b16 %v503, %v499
    %v676 = vpack.c.b16 %v504, %v500
    %v677 = vpack.c.b16 %v509, %v505
    %v678 = vpack.c.b16 %v510, %v506
    %v679 = vpack.c.b16 %v511, %v507
    %v680 = vpack.c.b16 %v512, %v508
    %v681 = vpack.c.b16 %v517, %v513
    %v682 = vpack.c.b16 %v518, %v514
    %v683 = vpack.c.b16 %v519, %v515
    %v684 = vpack.c.b16 %v520, %v516
    %v685 = vpack.c.b16 %v525, %v521
    %v686 = vpack.c.b16 %v526, %v522
    %v687 = vpack.c.b16 %v527, %v523
    %v688 = vpack.c.b16 %v528, %v524
    %v689 = vpack.c.b16 %v533, %v529
    %v690 = vpack.c.b16 %v534, %v530
    %v691 = vpack.c.b16 %v535, %v531
    %v692 = vpack.c.b16 %v536, %v532
    %v693 = vpack.c.b16 %v541, %v537
    %v694 = vpack.c.b16 %v542, %v538
    %v695 = vpack.c.b16 %v543, %v539
    %v696 = vpack.c.b16 %v544, %v540
    %v697 = vpack.c.b16 %v549, %v545
    %v698 = vpack.c.b16 %v550, %v546
    %v699 = vpack.c.b16 %v551, %v547
    %v700 = vpack.c.b16 %v552, %v548
    %v701 = vpack.c.b16 %v557, %v553
    %v702 = vpack.c.b16 %v558, %v554
    %v703 = vpack.c.b16 %v559, %v555
    %v704 = vpack.c.b16 %v560, %v556
    %v705 = vpack.c.b16 %v565, %v561
    %v706 = vpack.c.b16 %v566, %v562
    %v707 = vpack.c.b16 %v567, %v563
    %v708 = vpack.c.b16 %v568, %v564
    %v709 = vpack.c.b16 %v573, %v569
    %v710 = vpack.c.b16 %v574, %v570
    %v711 = vpack.c.b16 %v575, %v571
    %v712 = vpack.c.b16 %v576, %v572
    %v713 = vpack.c.b16 %v581, %v577
    %v714 = vpack.c.b16 %v582, %v578
    %v715 = vpack.c.b16 %v583, %v579
    %v716 = vpack.c.b16 %v584, %v580
    %v717 = vpack.c.b16 %v589, %v585
    %v718 = vpack.c.b16 %v590, %v586
    %v719 = vpack.c.b16 %v591, %v587
    %v720 = vpack.c.b16 %v592, %v588
    %849 = vmatprep.subr.bf16.mxu0 %v594
    %850 = vmatpush1.bf16.msra.mxu0 %v593
    %851 = vmatprep.subr.bf16.mxu0 %v598
    %852 = vmatpush1.bf16.msra.mxu0 %v597
    %853 = vmatprep.subr.bf16.mxu0 %v602
    %854 = vmatpush1.bf16.msra.mxu0 %v601
    %855 = vmatprep.subr.bf16.mxu0 %v606
    %856 = vmatpush1.bf16.msra.mxu0 %v605
    %857 = vmatprep.subr.bf16.mxu0 %v610
    %858 = vmatpush1.bf16.msra.mxu0 %v609
    %859 = vmatprep.subr.bf16.mxu0 %v614
    %860 = vmatpush1.bf16.msra.mxu0 %v613
    %861 = vmatprep.subr.bf16.mxu0 %v618
    %862 = vmatpush1.bf16.msra.mxu0 %v617
    %863 = vmatprep.subr.bf16.mxu0 %v622
    %864 = vmatpush1.bf16.msra.mxu0 %v621
    %865 = vmatprep.subr.bf16.mxu0 %v626
    %866 = vmatpush1.bf16.msra.mxu0 %v625
    %867 = vmatprep.subr.bf16.mxu0 %v630
    %868 = vmatpush1.bf16.msra.mxu0 %v629
    %869 = vmatprep.subr.bf16.mxu0 %v634
    %870 = vmatpush1.bf16.msra.mxu0 %v633
    %871 = vmatprep.subr.bf16.mxu0 %v638
    %872 = vmatpush1.bf16.msra.mxu0 %v637
    %873 = vmatprep.subr.bf16.mxu0 %v642
    %874 = vmatpush1.bf16.msra.mxu0 %v641
    %875 = vmatprep.subr.bf16.mxu0 %v646
    %876 = vmatpush1.bf16.msra.mxu0 %v645
    %877 = vmatprep.subr.bf16.mxu0 %v650
    %878 = vmatpush1.bf16.msra.mxu0 %v649
    %879 = vmatprep.subr.bf16.mxu0 %v654
    %880 = vmatpush1.bf16.msra.mxu0 %v653
    %881 = vmatprep.mubr.bf16.mxu0 %v202
    %882 = vmatmul.mubr.bf16.gmra.mrb[0].mxu0 %v201
    %v883 = vpop.f32.mrb[0].mxu0
    %v884 = vadd.f32 %v178, %v883
    %v885 = vpop.f32.mrb[0].mxu0
    %v886 = vadd.f32 %v182, %v885
    %v887 = vpop.f32.mrb[0].mxu0
    %v888 = vpop.f32.mrb[0].mxu0
    %889 = vdwg.mxu0
    %890 = vmatprep.subr.bf16.mxu0 %v658
    %891 = vmatpush1.bf16.msra.mxu0 %v657
    %892 = vmatprep.subr.bf16.mxu0 %v662
    %893 = vmatpush1.bf16.msra.mxu0 %v661
    %894 = vmatprep.subr.bf16.mxu0 %v666
    %895 = vmatpush1.bf16.msra.mxu0 %v665
    %896 = vmatprep.subr.bf16.mxu0 %v670
    %897 = vmatpush1.bf16.msra.mxu0 %v669
    %898 = vmatprep.subr.bf16.mxu0 %v674
    %899 = vmatpush1.bf16.msra.mxu0 %v673
    %900 = vmatprep.subr.bf16.mxu0 %v678
    %901 = vmatpush1.bf16.msra.mxu0 %v677
    %902 = vmatprep.subr.bf16.mxu0 %v682
    %903 = vmatpush1.bf16.msra.mxu0 %v681
    %904 = vmatprep.subr.bf16.mxu0 %v686
    %905 = vmatpush1.bf16.msra.mxu0 %v685
    %906 = vmatprep.subr.bf16.mxu0 %v690
    %907 = vmatpush1.bf16.msra.mxu0 %v689
    %908 = vmatprep.subr.bf16.mxu0 %v694
    %909 = vmatpush1.bf16.msra.mxu0 %v693
    %910 = vmatprep.subr.bf16.mxu0 %v698
    %911 = vmatpush1.bf16.msra.mxu0 %v697
    %912 = vmatprep.subr.bf16.mxu0 %v702
    %913 = vmatpush1.bf16.msra.mxu0 %v701
    %914 = vmatprep.subr.bf16.mxu0 %v706
    %915 = vmatpush1.bf16.msra.mxu0 %v705
    %916 = vmatprep.subr.bf16.mxu0 %v710
    %917 = vmatpush1.bf16.msra.mxu0 %v709
    %918 = vmatprep.subr.bf16.mxu0 %v714
    %919 = vmatpush1.bf16.msra.mxu0 %v713
    %920 = vmatprep.subr.bf16.mxu0 %v718
    %921 = vmatpush1.bf16.msra.mxu0 %v717
    %922 = vmatprep.mubr.bf16.mxu0 %v204
    %923 = vmatmul.mubr.bf16.gmra.mrb[0].mxu0 %v203
    %v924 = vpop.f32.mrb[0].mxu0
    %v925 = vadd.f32 %v884, %v924
    %v926 = vpop.f32.mrb[0].mxu0
    %v927 = vadd.f32 %v886, %v926
    %v928 = vpop.f32.mrb[0].mxu0
    %v929 = vpop.f32.mrb[0].mxu0
    %930 = vdwg.mxu0
    %931 = vmatprep.subr.bf16.mxu0 %v596
    %932 = vmatpush1.bf16.msra.mxu0 %v595
    %933 = vmatprep.subr.bf16.mxu0 %v600
    %934 = vmatpush1.bf16.msra.mxu0 %v599
    %935 = vmatprep.subr.bf16.mxu0 %v604
    %936 = vmatpush1.bf16.msra.mxu0 %v603
    %937 = vmatprep.subr.bf16.mxu0 %v608
    %938 = vmatpush1.bf16.msra.mxu0 %v607
    %939 = vmatprep.subr.bf16.mxu0 %v612
    %940 = vmatpush1.bf16.msra.mxu0 %v611
    %941 = vmatprep.subr.bf16.mxu0 %v616
    %942 = vmatpush1.bf16.msra.mxu0 %v615
    %943 = vmatprep.subr.bf16.mxu0 %v620
    %944 = vmatpush1.bf16.msra.mxu0 %v619
    %945 = vmatprep.subr.bf16.mxu0 %v624
    %946 = vmatpush1.bf16.msra.mxu0 %v623
    %947 = vmatprep.subr.bf16.mxu0 %v628
    %948 = vmatpush1.bf16.msra.mxu0 %v627
    %949 = vmatprep.subr.bf16.mxu0 %v632
    %950 = vmatpush1.bf16.msra.mxu0 %v631
    %951 = vmatprep.subr.bf16.mxu0 %v636
    %952 = vmatpush1.bf16.msra.mxu0 %v635
    %953 = vmatprep.subr.bf16.mxu0 %v640
    %954 = vmatpush1.bf16.msra.mxu0 %v639
    %955 = vmatprep.subr.bf16.mxu0 %v644
    %956 = vmatpush1.bf16.msra.mxu0 %v643
    %957 = vmatprep.subr.bf16.mxu0 %v648
    %958 = vmatpush1.bf16.msra.mxu0 %v647
    %959 = vmatprep.subr.bf16.mxu0 %v652
    %960 = vmatpush1.bf16.msra.mxu0 %v651
    %961 = vmatprep.subr.bf16.mxu0 %v656
    %962 = vmatpush1.bf16.msra.mxu0 %v655
    %963 = vmatprep.mubr.bf16.mxu0 %v202
    %964 = vmatmul.mubr.bf16.gmra.mrb[0].mxu0 %v201
    %v965 = vpop.f32.mrb[0].mxu0
    %v966 = vadd.f32 %v186, %v965
    %v967 = vpop.f32.mrb[0].mxu0
    %v968 = vadd.f32 %v190, %v967
    %v969 = vpop.f32.mrb[0].mxu0
    %v970 = vpop.f32.mrb[0].mxu0
    %971 = vdwg.mxu0
    %972 = vmatprep.subr.bf16.mxu0 %v660
    %973 = vmatpush1.bf16.msra.mxu0 %v659
    %974 = vmatprep.subr.bf16.mxu0 %v664
    %975 = vmatpush1.bf16.msra.mxu0 %v663
    %976 = vmatprep.subr.bf16.mxu0 %v668
    %977 = vmatpush1.bf16.msra.mxu0 %v667
    %978 = vmatprep.subr.bf16.mxu0 %v672
    %979 = vmatpush1.bf16.msra.mxu0 %v671
    %980 = vmatprep.subr.bf16.mxu0 %v676
    %981 = vmatpush1.bf16.msra.mxu0 %v675
    %982 = vmatprep.subr.bf16.mxu0 %v680
    %983 = vmatpush1.bf16.msra.mxu0 %v679
    %984 = vmatprep.subr.bf16.mxu0 %v684
    %985 = vmatpush1.bf16.msra.mxu0 %v683
    %986 = vmatprep.subr.bf16.mxu0 %v688
    %987 = vmatpush1.bf16.msra.mxu0 %v687
    %988 = vmatprep.subr.bf16.mxu0 %v692
    %989 = vmatpush1.bf16.msra.mxu0 %v691
    %990 = vmatprep.subr.bf16.mxu0 %v696
    %991 = vmatpush1.bf16.msra.mxu0 %v695
    %992 = vmatprep.subr.bf16.mxu0 %v700
    %993 = vmatpush1.bf16.msra.mxu0 %v699
    %994 = vmatprep.subr.bf16.mxu0 %v704
    %995 = vmatpush1.bf16.msra.mxu0 %v703
    %996 = vmatprep.subr.bf16.mxu0 %v708
    %997 = vmatpush1.bf16.msra.mxu0 %v707
    %998 = vmatprep.subr.bf16.mxu0 %v712
    %999 = vmatpush1.bf16.msra.mxu0 %v711
    %1000 = vmatprep.subr.bf16.mxu0 %v716
    %1001 = vmatpush1.bf16.msra.mxu0 %v715
    %1002 = vmatprep.subr.bf16.mxu0 %v720
    %1003 = vmatpush1.bf16.msra.mxu0 %v719
    %1004 = vmatprep.mubr.bf16.mxu0 %v204
    %1005 = vmatmul.mubr.bf16.gmra.mrb[0].mxu0 %v203
    %v1006 = vpop.f32.mrb[0].mxu0
    %v1007 = vadd.f32 %v966, %v1006
    %v1008 = vpop.f32.mrb[0].mxu0
    %v1009 = vadd.f32 %v968, %v1008
    %v1010 = vpop.f32.mrb[0].mxu0
    %v1011 = vpop.f32.mrb[0].mxu0
    %1012 = vdwg.mxu0
    %v1013 = vmax.f32 %v925, 0.0
    %v1014 = vmax.f32 %v927, 0.0
    %v1015 = vmax.f32 %v1007, 0.0
    %v1016 = vmax.f32 %v1009, 0.0
    %v1017 = vpack.c.bf16 %v1013, %v1013
    %v1018 = vpack.c.bf16 %v1014, %v1014
    %v1019 = vpack.c.bf16 %v1015, %v1015
    %v1020 = vpack.c.bf16 %v1016, %v1016
    %v1021 = vld [vmem:[%s3] sm:$0xf]
    %v1022 = vld [vmem:[%s3 + $0x4] sm:$0xf]
    %v1023 = vld [vmem:[%s3 + $0x8] sm:$0xf]
    %v1024 = vld [vmem:[%s3 + $0xc] sm:$0xf]
    %v1025 = vld [vmem:[%s3 + $0x10] sm:$0xf]
    %v1026 = vld [vmem:[%s3 + $0x14] sm:$0xf]
    %v1027 = vld [vmem:[%s3 + $0x18] sm:$0xf]
    %v1028 = vld [vmem:[%s3 + $0x1c] sm:$0xf]
    %v1029 = vld [vmem:[%s3 + $0x20] sm:$0xf]
    %v1030 = vld [vmem:[%s3 + $0x24] sm:$0xf]
    %v1031 = vld [vmem:[%s3 + $0x28] sm:$0xf]
    %v1032 = vld [vmem:[%s3 + $0x2c] sm:$0xf]
    %v1033 = vld [vmem:[%s3 + $0x30] sm:$0xf]
    %v1034 = vld [vmem:[%s3 + $0x34] sm:$0xf]
    %v1035 = vld [vmem:[%s3 + $0x38] sm:$0xf]
    %v1036 = vld [vmem:[%s3 + $0x3c] sm:$0xf]
    %v1037 = vld [vmem:[%s3 + $0x40] sm:$0xf]
    %v1038 = vld [vmem:[%s3 + $0x44] sm:$0xf]
    %v1039 = vld [vmem:[%s3 + $0x48] sm:$0xf]
    %v1040 = vld [vmem:[%s3 + $0x4c] sm:$0xf]
    %v1041 = vld [vmem:[%s3 + $0x50] sm:$0xf]
    %v1042 = vld [vmem:[%s3 + $0x54] sm:$0xf]
    %v1043 = vld [vmem:[%s3 + $0x58] sm:$0xf]
    %v1044 = vld [vmem:[%s3 + $0x5c] sm:$0xf]
    %v1045 = vld [vmem:[%s3 + $0x60] sm:$0xf]
    %v1046 = vld [vmem:[%s3 + $0x64] sm:$0xf]
    %v1047 = vld [vmem:[%s3 + $0x68] sm:$0xf]
    %v1048 = vld [vmem:[%s3 + $0x6c] sm:$0xf]
    %v1049 = vld [vmem:[%s3 + $0x70] sm:$0xf]
    %v1050 = vld [vmem:[%s3 + $0x74] sm:$0xf]
    %v1051 = vld [vmem:[%s3 + $0x78] sm:$0xf]
    %v1052 = vld [vmem:[%s3 + $0x7c] sm:$0xf]
    %v1053 = vld [vmem:[%s3 + $0x80] sm:$0xf]
    %v1054 = vld [vmem:[%s3 + $0x84] sm:$0xf]
    %v1055 = vld [vmem:[%s3 + $0x88] sm:$0xf]
    %v1056 = vld [vmem:[%s3 + $0x8c] sm:$0xf]
    %v1057 = vld [vmem:[%s3 + $0x90] sm:$0xf]
    %v1058 = vld [vmem:[%s3 + $0x94] sm:$0xf]
    %v1059 = vld [vmem:[%s3 + $0x98] sm:$0xf]
    %v1060 = vld [vmem:[%s3 + $0x9c] sm:$0xf]
    %v1061 = vld [vmem:[%s3 + $0xa0] sm:$0xf]
    %v1062 = vld [vmem:[%s3 + $0xa4] sm:$0xf]
    %v1063 = vld [vmem:[%s3 + $0xa8] sm:$0xf]
    %v1064 = vld [vmem:[%s3 + $0xac] sm:$0xf]
    %v1065 = vld [vmem:[%s3 + $0xb0] sm:$0xf]
    %v1066 = vld [vmem:[%s3 + $0xb4] sm:$0xf]
    %v1067 = vld [vmem:[%s3 + $0xb8] sm:$0xf]
    %v1068 = vld [vmem:[%s3 + $0xbc] sm:$0xf]
    %v1069 = vld [vmem:[%s3 + $0xc0] sm:$0xf]
    %v1070 = vld [vmem:[%s3 + $0xc4] sm:$0xf]
    %v1071 = vld [vmem:[%s3 + $0xc8] sm:$0xf]
    %v1072 = vld [vmem:[%s3 + $0xcc] sm:$0xf]
    %v1073 = vld [vmem:[%s3 + $0xd0] sm:$0xf]
    %v1074 = vld [vmem:[%s3 + $0xd4] sm:$0xf]
    %v1075 = vld [vmem:[%s3 + $0xd8] sm:$0xf]
    %v1076 = vld [vmem:[%s3 + $0xdc] sm:$0xf]
    %v1077 = vld [vmem:[%s3 + $0xe0] sm:$0xf]
    %v1078 = vld [vmem:[%s3 + $0xe4] sm:$0xf]
    %v1079 = vld [vmem:[%s3 + $0xe8] sm:$0xf]
    %v1080 = vld [vmem:[%s3 + $0xec] sm:$0xf]
    %v1081 = vld [vmem:[%s3 + $0xf0] sm:$0xf]
    %v1082 = vld [vmem:[%s3 + $0xf4] sm:$0xf]
    %v1083 = vld [vmem:[%s3 + $0xf8] sm:$0xf]
    %v1084 = vld [vmem:[%s3 + $0xfc] sm:$0xf]
    %v1085 = vld [vmem:[%s4] sm:$0x1]
    %v1087 = vlaneseq
    %v1088 = vshrl.u32 %v1087, 7
    %v1089 = vsub.s32 0, %v1088
    %v1090 = vrot.slane %v1085, %v1089
    %v1156 = vunpack.c.l.b16 %v1021
    %v1157 = vunpack.c.l.b16 %v1022
    %v1158 = vunpack.c.l.b16 %v1023
    %v1159 = vunpack.c.l.b16 %v1024
    %v1160 = vunpack.c.l.b16 %v1025
    %v1161 = vunpack.c.l.b16 %v1026
    %v1162 = vunpack.c.l.b16 %v1027
    %v1163 = vunpack.c.l.b16 %v1028
    %v1164 = vunpack.c.l.b16 %v1029
    %v1165 = vunpack.c.l.b16 %v1030
    %v1166 = vunpack.c.l.b16 %v1031
    %v1167 = vunpack.c.l.b16 %v1032
    %v1168 = vunpack.c.l.b16 %v1033
    %v1169 = vunpack.c.l.b16 %v1034
    %v1170 = vunpack.c.l.b16 %v1035
    %v1171 = vunpack.c.l.b16 %v1036
    %v1172 = vunpack.c.l.b16 %v1037
    %v1173 = vunpack.c.l.b16 %v1038
    %v1174 = vunpack.c.l.b16 %v1039
    %v1175 = vunpack.c.l.b16 %v1040
    %v1176 = vunpack.c.l.b16 %v1041
    %v1177 = vunpack.c.l.b16 %v1042
    %v1178 = vunpack.c.l.b16 %v1043
    %v1179 = vunpack.c.l.b16 %v1044
    %v1180 = vunpack.c.l.b16 %v1045
    %v1181 = vunpack.c.l.b16 %v1046
    %v1182 = vunpack.c.l.b16 %v1047
    %v1183 = vunpack.c.l.b16 %v1048
    %v1184 = vunpack.c.l.b16 %v1049
    %v1185 = vunpack.c.l.b16 %v1050
    %v1186 = vunpack.c.l.b16 %v1051
    %v1187 = vunpack.c.l.b16 %v1052
    %v1188 = vunpack.c.l.b16 %v1053
    %v1189 = vunpack.c.l.b16 %v1054
    %v1190 = vunpack.c.l.b16 %v1055
    %v1191 = vunpack.c.l.b16 %v1056
    %v1192 = vunpack.c.l.b16 %v1057
    %v1193 = vunpack.c.l.b16 %v1058
    %v1194 = vunpack.c.l.b16 %v1059
    %v1195 = vunpack.c.l.b16 %v1060
    %v1196 = vunpack.c.l.b16 %v1061
    %v1197 = vunpack.c.l.b16 %v1062
    %v1198 = vunpack.c.l.b16 %v1063
    %v1199 = vunpack.c.l.b16 %v1064
    %v1200 = vunpack.c.l.b16 %v1065
    %v1201 = vunpack.c.l.b16 %v1066
    %v1202 = vunpack.c.l.b16 %v1067
    %v1203 = vunpack.c.l.b16 %v1068
    %v1204 = vunpack.c.l.b16 %v1069
    %v1205 = vunpack.c.l.b16 %v1070
    %v1206 = vunpack.c.l.b16 %v1071
    %v1207 = vunpack.c.l.b16 %v1072
    %v1208 = vunpack.c.l.b16 %v1073
    %v1209 = vunpack.c.l.b16 %v1074
    %v1210 = vunpack.c.l.b16 %v1075
    %v1211 = vunpack.c.l.b16 %v1076
    %v1212 = vunpack.c.l.b16 %v1077
    %v1213 = vunpack.c.l.b16 %v1078
    %v1214 = vunpack.c.l.b16 %v1079
    %v1215 = vunpack.c.l.b16 %v1080
    %v1216 = vunpack.c.l.b16 %v1081
    %v1217 = vunpack.c.l.b16 %v1082
    %v1218 = vunpack.c.l.b16 %v1083
    %v1219 = vunpack.c.l.b16 %v1084
    %v1220 = vpack.c.b16 %v1157, %v1156
    %v1221 = vpack.c.b16 %v1159, %v1158
    %v1222 = vpack.c.b16 %v1161, %v1160
    %v1223 = vpack.c.b16 %v1163, %v1162
    %v1224 = vpack.c.b16 %v1165, %v1164
    %v1225 = vpack.c.b16 %v1167, %v1166
    %v1226 = vpack.c.b16 %v1169, %v1168
    %v1227 = vpack.c.b16 %v1171, %v1170
    %v1228 = vpack.c.b16 %v1173, %v1172
    %v1229 = vpack.c.b16 %v1175, %v1174
    %v1230 = vpack.c.b16 %v1177, %v1176
    %v1231 = vpack.c.b16 %v1179, %v1178
    %v1232 = vpack.c.b16 %v1181, %v1180
    %v1233 = vpack.c.b16 %v1183, %v1182
    %v1234 = vpack.c.b16 %v1185, %v1184
    %v1235 = vpack.c.b16 %v1187, %v1186
    %v1236 = vpack.c.b16 %v1189, %v1188
    %v1237 = vpack.c.b16 %v1191, %v1190
    %v1238 = vpack.c.b16 %v1193, %v1192
    %v1239 = vpack.c.b16 %v1195, %v1194
    %v1240 = vpack.c.b16 %v1197, %v1196
    %v1241 = vpack.c.b16 %v1199, %v1198
    %v1242 = vpack.c.b16 %v1201, %v1200
    %v1243 = vpack.c.b16 %v1203, %v1202
    %v1244 = vpack.c.b16 %v1205, %v1204
    %v1245 = vpack.c.b16 %v1207, %v1206
    %v1246 = vpack.c.b16 %v1209, %v1208
    %v1247 = vpack.c.b16 %v1211, %v1210
    %v1248 = vpack.c.b16 %v1213, %v1212
    %v1249 = vpack.c.b16 %v1215, %v1214
    %v1250 = vpack.c.b16 %v1217, %v1216
    %v1251 = vpack.c.b16 %v1219, %v1218
    %1284 = vmatprep.subr.bf16.mxu0 0
    %1285 = vmatpush1.bf16.msra.mxu0 %v1220
    %1286 = vmatprep.subr.bf16.mxu0 0
    %1287 = vmatpush1.bf16.msra.mxu0 %v1221
    %1288 = vmatprep.subr.bf16.mxu0 0
    %1289 = vmatpush1.bf16.msra.mxu0 %v1222
    %1290 = vmatprep.subr.bf16.mxu0 0
    %1291 = vmatpush1.bf16.msra.mxu0 %v1223
    %1292 = vmatprep.subr.bf16.mxu0 0
    %1293 = vmatpush1.bf16.msra.mxu0 %v1224
    %1294 = vmatprep.subr.bf16.mxu0 0
    %1295 = vmatpush1.bf16.msra.mxu0 %v1225
    %1296 = vmatprep.subr.bf16.mxu0 0
    %1297 = vmatpush1.bf16.msra.mxu0 %v1226
    %1298 = vmatprep.subr.bf16.mxu0 0
    %1299 = vmatpush1.bf16.msra.mxu0 %v1227
    %1300 = vmatprep.subr.bf16.mxu0 0
    %1301 = vmatpush1.bf16.msra.mxu0 %v1228
    %1302 = vmatprep.subr.bf16.mxu0 0
    %1303 = vmatpush1.bf16.msra.mxu0 %v1229
    %1304 = vmatprep.subr.bf16.mxu0 0
    %1305 = vmatpush1.bf16.msra.mxu0 %v1230
    %1306 = vmatprep.subr.bf16.mxu0 0
    %1307 = vmatpush1.bf16.msra.mxu0 %v1231
    %1308 = vmatprep.subr.bf16.mxu0 0
    %1309 = vmatpush1.bf16.msra.mxu0 %v1232
    %1310 = vmatprep.subr.bf16.mxu0 0
    %1311 = vmatpush1.bf16.msra.mxu0 %v1233
    %1312 = vmatprep.subr.bf16.mxu0 0
    %1313 = vmatpush1.bf16.msra.mxu0 %v1234
    %1314 = vmatprep.subr.bf16.mxu0 0
    %1315 = vmatpush1.bf16.msra.mxu0 %v1235
    %1316 = vmatprep.mubr.bf16.mxu0 %v1018
    %1317 = vmatmul.mubr.bf16.gmra.mrb[0].mxu0 %v1017
    %v1318 = vpop.f32.mrb[0].mxu0
    %v1319 = vadd.f32 %v1090, %v1318
    %v1320 = vpop.f32.mrb[0].mxu0
    %v1321 = vpop.f32.mrb[0].mxu0
    %v1322 = vpop.f32.mrb[0].mxu0
    %1323 = vdwg.mxu0
    %1324 = vmatprep.subr.bf16.mxu0 0
    %1325 = vmatpush1.bf16.msra.mxu0 %v1236
    %1326 = vmatprep.subr.bf16.mxu0 0
    %1327 = vmatpush1.bf16.msra.mxu0 %v1237
    %1328 = vmatprep.subr.bf16.mxu0 0
    %1329 = vmatpush1.bf16.msra.mxu0 %v1238
    %1330 = vmatprep.subr.bf16.mxu0 0
    %1331 = vmatpush1.bf16.msra.mxu0 %v1239
    %1332 = vmatprep.subr.bf16.mxu0 0
    %1333 = vmatpush1.bf16.msra.mxu0 %v1240
    %1334 = vmatprep.subr.bf16.mxu0 0
    %1335 = vmatpush1.bf16.msra.mxu0 %v1241
    %1336 = vmatprep.subr.bf16.mxu0 0
    %1337 = vmatpush1.bf16.msra.mxu0 %v1242
    %1338 = vmatprep.subr.bf16.mxu0 0
    %1339 = vmatpush1.bf16.msra.mxu0 %v1243
    %1340 = vmatprep.subr.bf16.mxu0 0
    %1341 = vmatpush1.bf16.msra.mxu0 %v1244
    %1342 = vmatprep.subr.bf16.mxu0 0
    %1343 = vmatpush1.bf16.msra.mxu0 %v1245
    %1344 = vmatprep.subr.bf16.mxu0 0
    %1345 = vmatpush1.bf16.msra.mxu0 %v1246
    %1346 = vmatprep.subr.bf16.mxu0 0
    %1347 = vmatpush1.bf16.msra.mxu0 %v1247
    %1348 = vmatprep.subr.bf16.mxu0 0
    %1349 = vmatpush1.bf16.msra.mxu0 %v1248
    %1350 = vmatprep.subr.bf16.mxu0 0
    %1351 = vmatpush1.bf16.msra.mxu0 %v1249
    %1352 = vmatprep.subr.bf16.mxu0 0
    %1353 = vmatpush1.bf16.msra.mxu0 %v1250
    %1354 = vmatprep.subr.bf16.mxu0 0
    %1355 = vmatpush1.bf16.msra.mxu0 %v1251
    %1356 = vmatprep.mubr.bf16.mxu0 %v1020
    %1357 = vmatmul.mubr.bf16.gmra.mrb[0].mxu0 %v1019
    %v1358 = vpop.f32.mrb[0].mxu0
    %v1359 = vadd.f32 %v1319, %v1358
    %v1360 = vpop.f32.mrb[0].mxu0
    %v1361 = vpop.f32.mrb[0].mxu0
    %v1362 = vpop.f32.mrb[0].mxu0
    %1363 = vdwg.mxu0
    %v1364 = vmax.f32 %v1359, 0.0
    %v1365 = vld [vmem:[%s5] sm:$0x1]
    %v1367 = vlaneseq
    %v1368 = vshrl.u32 %v1367, 7
    %v1369 = vsub.s32 0, %v1368
    %v1370 = vrot.slane %v1365, %v1369
    %v1372 = vmul.f32 %v1364, %v1370
    %vm1373 = vcmask 523264
    %v1374 = vsel %vm1373, %v1372, 0.0
    %1375 = vadd.xlane.f32.xlu0 %v1374
    %v1376 = vpop.xlane.xlu0 %1375
    %v1377 = vld [vmem:[#allocation2] sm:$0x1]
    %v1379 = vlaneseq
    %v1380 = vshrl.u32 %v1379, 7
    %v1381 = vsub.s32 0, %v1380
    %v1382 = vrot.slane %v1377, %v1381
    %v1384 = vadd.f32 %v1376, %v1382
    %vm1385 = vcmask 7168
    %1386 = vst.msk [vmem:[%s7] sm:$0xff] %vm1385, %v1384
    // Predicated region
    $region34: #{tpu_custom_call.1} parent=1 // pred_check
      _
    $region35: #{tpu_custom_call.1} parent=1 // pred_check_branch
      %1388 = sbr.rel (0) target = $region37
    $region36: #{tpu_custom_call.1} parent=1 // pred_region
      _
    $region37: #{tpu_custom_call.1} parent=1 // pred_fallthru
      _
    // Predicated region
    $region38: #{tpu_custom_call.1} parent=1 // pred_check
      _
    $region39: #{tpu_custom_call.1} parent=1 // pred_check_branch
      %1390 = sbr.rel (0) target = $region41
    $region40: #{tpu_custom_call.1} parent=1 // pred_region
      _
    $region41: #{tpu_custom_call.1} parent=1 // pred_fallthru
      _
    %1391 = vsyncpa [#allocation4], 1

</llo_original>
